<compile_context>
chip_gen: v5e
topology: v5e:2x2
jax: 0.10.0
libtpu: 0.0.40
codegen_flags: <defaults>
</compile_context>

<pallas_src>
import math
import functools

import jax
import jax.numpy as jnp
from jax.experimental import pallas as pl
from jax.experimental.pallas import tpu as pltpu


def _sin_pos_emb_kernel(x_ref, f_ref, p_ref, o_ref, *, k):
    # x_ref: (TB, k)       f32 timesteps, k logical rows packed per physical row
    # f_ref: (k, k*dim)    f32 block-diagonal freq table (row j nonzero only in
    #                          lanes [j*dim, (j+1)*dim))
    # p_ref: (1, k*dim)    f32 phase table (0 sin half, pi/2 cos half, 0 pad col)
    # o_ref: (TB, k*dim)
    emb = x_ref[:, 0:1] * f_ref[0:1, :]            # (TB,1)*(1,W) lane broadcast
    for j in range(1, k):                          # unrolled exact-f32 VPU FMAs;
        emb = emb + x_ref[:, j:j + 1] * f_ref[j:j + 1, :]   # one nonzero term/lane
    o_ref[...] = jnp.sin(emb + p_ref[...]).astype(o_ref.dtype)   # single dense store


def sinusoidal_pos_emb(x, dim, out_dtype=jnp.float32):
    """x: (B,) any real dtype -> (B, dim) sinusoidal time embedding."""
    assert dim >= 2, "dim must be >= 2"
    B = x.shape[0]
    half = dim // 2
    pad = dim - 2 * half
    # NOTE: like the PyTorch module, dim >= 4 is expected (half - 1 > 0);
    # guard the Python division so dim in {2, 3} doesn't crash at trace time.
    scale = math.log(10000.0) / max(half - 1, 1)
    freqs = jnp.exp(jnp.arange(half, dtype=jnp.float32) * (-scale))          # (half,)

    # Fused per-column tables: out[:, d] = sin(x * freq_full[d] + phase_full[d]).
    freq_full = jnp.concatenate([freqs, freqs, jnp.zeros((pad,), jnp.float32)])
    phase_full = jnp.concatenate([jnp.zeros((half,), jnp.float32),
                                  jnp.full((half,), 0.5 * math.pi, jnp.float32),
                                  jnp.zeros((pad,), jnp.float32)])

    # Lane packing: k logical rows per physical row so the output block is
    # >= 128 lanes wide when possible.  k divides B exactly -> free reshape,
    # never a pad/slice pass over the output.
    k = math.gcd(max(1, 128 // dim), B) if dim < 128 else 1
    width = k * dim
    B_rows = B // k

    # Block-diagonal freq table (k, k*dim): F[j', j*dim+d] = (j'==j) * freq_full[d].
    f_table = (jnp.eye(k, dtype=jnp.float32)[:, :, None]
               * freq_full[None, None, :]).reshape(k, width)
    p_table = jnp.tile(phase_full, (k,)).reshape(1, width)
    x2 = x.astype(jnp.float32).reshape(B_rows, k)

    # Batch tile: VMEM-budgeted, multiple of 8 sublanes, >= 2 grid steps when
    # B_rows >= 16 so both v7x TensorCores get work.
    if B_rows <= 8:
        TB = B_rows                                   # block == full dim (allowed)
    else:
        vmem_budget = 16 * 1024 * 1024                # ~5 live f32 copies of the tile
        TB = min(1024, max(8, vmem_budget // (5 * width * 4)))
        if B_rows >= 16:
            TB = min(TB, (-(-B_rows // 2) + 7) // 8 * 8)     # >= 2 grid steps
        TB = min(TB, max(8, B_rows // 8 * 8))
        TB = max(8, TB // 8 * 8)
    grid = (pl.cdiv(B_rows, TB),)                     # ragged last block is masked

    tile_bytes = TB * width * 4                       # f32 temporaries dominate
    vmem_limit = int(min(32 * 1024 * 1024, max(4 * 1024 * 1024, 8 * tile_bytes)))

    cost = pl.CostEstimate(
        flops=2 * B * dim,                            # mul + add per element
        transcendentals=B * dim,                      # one sin per element
        bytes_accessed=(B * dim + B + (k + 1) * width) * 4,
    )

    out = pl.pallas_call(
        functools.partial(_sin_pos_emb_kernel, k=k),
        out_shape=jax.ShapeDtypeStruct((B_rows, width), out_dtype),
        grid=grid,
        in_specs=[
            pl.BlockSpec((TB, k), lambda i: (i, 0)),      # packed timesteps tile
            pl.BlockSpec((k, width), lambda i: (0, 0)),   # resident freq table
            pl.BlockSpec((1, width), lambda i: (0, 0)),   # resident phase table
        ],
        out_specs=pl.BlockSpec((TB, width), lambda i: (i, 0)),
        compiler_params=pltpu.CompilerParams(
            dimension_semantics=("parallel",),            # megacore sharding (v7x)
            vmem_limit_bytes=vmem_limit,
        ),
        cost_estimate=cost,
    )(x2, f_table, p_table)

    return out.reshape(B, dim) if k > 1 else out


def _reference(x, dim):
    half = dim // 2
    scale = math.log(10000.0) / max(half - 1, 1)
    freqs = jnp.exp(jnp.arange(half, dtype=jnp.float32) * (-scale))
    emb = x.astype(jnp.float32)[:, None] * freqs[None, :]
    emb = jnp.concatenate([jnp.sin(emb), jnp.cos(emb)], axis=-1)
    if dim % 2 == 1:
        emb = jnp.pad(emb, ((0, 0), (0, 1)))
    return emb


if __name__ == "__main__":
    key = jax.random.PRNGKey(0)
    # (B, dim) cases: packed lanes (32), odd dim (33), ragged grid (50x40),
    # lane-dense multi-step grid (16x256).
    checks = [(8, 32), (8, 33), (50, 40), (16, 256)]
    for B, dim in checks:
        key, sub = jax.random.split(key)
        # diffusion-style integer timesteps in [0, 1000)
        x = jax.random.randint(sub, (B,), 0, 1000).astype(jnp.float32)
        out = jax.block_until_ready(sinusoidal_pos_emb(x, dim))
        ref = _reference(x, dim)
        assert out.shape == (B, dim), (out.shape, B, dim)
        # TPU sin/cos (and the cos = sin(t + pi/2) phase trick) are polynomial
        # approximations; for arguments up to ~1e3 compare at 5e-3 absolute
        # tolerance (outputs are in [-1, 1]).
        err = float(jnp.max(jnp.abs(out - ref)))
        assert err < 5e-3, f"(B={B}, dim={dim}) mismatch, max abs err = {err}"
    print("KERNEL_OK")
</pallas_src>

<mosaic_0001>
module attributes {stable_mosaic.version = 11 : i64} {
  func.func @_sin_pos_emb_kernel(%arg0: i32, %arg1: memref<2x4xf32, #tpu.memory_space<vmem>>, %arg2: memref<4x128xf32, #tpu.memory_space<vmem>>, %arg3: memref<1x128xf32, #tpu.memory_space<vmem>>, %arg4: memref<2x128xf32, #tpu.memory_space<vmem>>) attributes {dimension_semantics = [#tpu.dimension_semantics<parallel>], iteration_bounds = array<i64: 1>, scalar_prefetch = 0 : i64, scratch_operands = 0 : i64, tpu.core_type = #tpu.core_type<tc>, window_params = [{transform_indices = @transform_0, window_bounds = array<i64: 2, 4>}, {pipeline_mode = #tpu.pipeline_mode<synchronous>, transform_indices = @transform_1, window_bounds = array<i64: 4, 128>}, {pipeline_mode = #tpu.pipeline_mode<synchronous>, transform_indices = @transform_2, window_bounds = array<i64: 1, 128>}, {transform_indices = @transform_3, window_bounds = array<i64: 2, 128>}]} {
    %c0 = arith.constant 0 : index
    %c0_0 = arith.constant 0 : index
    %0 = vector.load %arg1[%c0, %c0_0] : memref<2x4xf32, #tpu.memory_space<vmem>>, vector<2x1xf32>
    %c0_1 = arith.constant 0 : index
    %c0_2 = arith.constant 0 : index
    %1 = vector.load %arg2[%c0_1, %c0_2] : memref<4x128xf32, #tpu.memory_space<vmem>>, vector<1x128xf32>
    %2 = vector.broadcast %0 : vector<2x1xf32> to vector<2x128xf32>
    %3 = vector.broadcast %1 : vector<1x128xf32> to vector<2x128xf32>
    %4 = arith.mulf %2, %3 : vector<2x128xf32>
    %c0_3 = arith.constant 0 : index
    %c1 = arith.constant 1 : index
    %5 = vector.load %arg1[%c0_3, %c1] : memref<2x4xf32, #tpu.memory_space<vmem>>, vector<2x1xf32>
    %c1_4 = arith.constant 1 : index
    %c0_5 = arith.constant 0 : index
    %6 = vector.load %arg2[%c1_4, %c0_5] : memref<4x128xf32, #tpu.memory_space<vmem>>, vector<1x128xf32>
    %7 = vector.broadcast %5 : vector<2x1xf32> to vector<2x128xf32>
    %8 = vector.broadcast %6 : vector<1x128xf32> to vector<2x128xf32>
    %9 = arith.mulf %7, %8 : vector<2x128xf32>
    %10 = arith.addf %4, %9 : vector<2x128xf32>
    %c0_6 = arith.constant 0 : index
    %c2 = arith.constant 2 : index
    %11 = vector.load %arg1[%c0_6, %c2] : memref<2x4xf32, #tpu.memory_space<vmem>>, vector<2x1xf32>
    %c2_7 = arith.constant 2 : index
    %c0_8 = arith.constant 0 : index
    %12 = vector.load %arg2[%c2_7, %c0_8] : memref<4x128xf32, #tpu.memory_space<vmem>>, vector<1x128xf32>
    %13 = vector.broadcast %11 : vector<2x1xf32> to vector<2x128xf32>
    %14 = vector.broadcast %12 : vector<1x128xf32> to vector<2x128xf32>
    %15 = arith.mulf %13, %14 : vector<2x128xf32>
    %16 = arith.addf %10, %15 : vector<2x128xf32>
    %c0_9 = arith.constant 0 : index
    %c3 = arith.constant 3 : index
    %17 = vector.load %arg1[%c0_9, %c3] : memref<2x4xf32, #tpu.memory_space<vmem>>, vector<2x1xf32>
    %c3_10 = arith.constant 3 : index
    %c0_11 = arith.constant 0 : index
    %18 = vector.load %arg2[%c3_10, %c0_11] : memref<4x128xf32, #tpu.memory_space<vmem>>, vector<1x128xf32>
    %19 = vector.broadcast %17 : vector<2x1xf32> to vector<2x128xf32>
    %20 = vector.broadcast %18 : vector<1x128xf32> to vector<2x128xf32>
    %21 = arith.mulf %19, %20 : vector<2x128xf32>
    %22 = arith.addf %16, %21 : vector<2x128xf32>
    %c0_12 = arith.constant 0 : index
    %c0_13 = arith.constant 0 : index
    %23 = vector.load %arg3[%c0_12, %c0_13] : memref<1x128xf32, #tpu.memory_space<vmem>>, vector<1x128xf32>
    %24 = vector.broadcast %23 : vector<1x128xf32> to vector<2x128xf32>
    %25 = arith.addf %22, %24 : vector<2x128xf32>
    %26 = math.sin %25 : vector<2x128xf32>
    %c0_14 = arith.constant 0 : index
    %c0_15 = arith.constant 0 : index
    %27 = vector.load %arg4[%c0_14, %c0_15] : memref<2x128xf32, #tpu.memory_space<vmem>>, vector<2x128xf32>
    tpu.vector_store %arg4[%c0_14, %c0_15], %26 {strides = array<i32>} : memref<2x128xf32, #tpu.memory_space<vmem>>, vector<2x128xf32>,
    return
  }
  func.func @transform_0(%arg0: i32) -> (i32, i32) {
    %c0_i32 = arith.constant 0 : i32
    %c0_i32_0 = arith.constant 0 : i32
    return %arg0, %c0_i32 : i32, i32
  }
  func.func @transform_1(%arg0: i32) -> (i32, i32) {
    %c0_i32 = arith.constant 0 : i32
    %c0_i32_0 = arith.constant 0 : i32
    %c0_i32_1 = arith.constant 0 : i32
    return %c0_i32, %c0_i32_0 : i32, i32
  }
  func.func @transform_2(%arg0: i32) -> (i32, i32) {
    %c0_i32 = arith.constant 0 : i32
    %c0_i32_0 = arith.constant 0 : i32
    %c0_i32_1 = arith.constant 0 : i32
    return %c0_i32, %c0_i32_0 : i32, i32
  }
  func.func @transform_3(%arg0: i32) -> (i32, i32) {
    %c0_i32 = arith.constant 0 : i32
    %c0_i32_0 = arith.constant 0 : i32
    return %arg0, %c0_i32 : i32, i32
  }
}

</mosaic_0001>

<llo_original>
// kernel: tpu_custom_call.1
$region0: #{tpu_custom_call.1}
  #allocation0 [shape = 'u32[]', space=smem, size = 0x4, offset = 0x4, fixed_abs, tag = 'smem constant byte address 0x4 - core index']
  #allocation1 [shape = 'u32[72,128]{1,0:T(1,128)}', space=vmem, size = 0x9000, scoped, tag = 'internal scratch']
  %s0 = inlined_call_operand.hbm [shape: f32[2,4], index: 0, kind: input, shape index: {}]
  %s1 = inlined_call_operand.hbm [shape: f32[4,128], index: 1, kind: input, shape index: {}]
  %s2 = inlined_call_operand.vmem [shape: f32[1,128], index: 2, kind: input, shape index: {}]
  %s3 = inlined_call_operand.hbm [shape: f32[2,128], index: 3, kind: output, shape index: {}]
  %s4 = sld [smem:[#allocation0]]
  $region30: #{tpu_custom_call.1} parent=0
    _
  %s6 = ssub.s32 1, %s4
  %s7 = scalar_select 0, %s6, %s4
  $region1: #{tpu_custom_call.1} parent=0
    #allocation2 [shape = 'u8[1024]{0}', space=vmem, size = 0x400, scoped, tag = 'input window, operand 0, single buffered']
    #allocation3 [shape = 's32[1]{0}', space=sflag, size = 0x4, scoped, tag = 'scoped memory for tpu_custom_call.1']
    #allocation4 [shape = 's32[1]{0}', space=sflag, size = 0x4, scoped, tag = 'scoped memory for tpu_custom_call.1']
    #allocation5 [shape = 'u8[2048]{0}', space=vmem, size = 0x800, scoped, tag = 'input window, operand 1, single buffered']
    #allocation6 [shape = 's32[1]{0}', space=sflag, size = 0x4, scoped, tag = 'scoped memory for tpu_custom_call.1']
    #allocation7 [shape = 'u8[1024]{0}', space=vmem, size = 0x400, scoped, tag = 'output window, operand 0, single buffered']
    %8 = vsyncpa [#allocation3], 0
    %9 = vsyncpa [#allocation6], 0
    %10 = vsyncpa [#allocation4], 0
    // Predicated region
    $region2: #{tpu_custom_call.1} parent=1 // pred_check
      _
    $region3: #{tpu_custom_call.1} parent=1 // pred_check_branch
      %12 = sbr.rel (0) target = $region5
    $region4: #{tpu_custom_call.1} parent=1 // pred_region
      %14 = vsyncadd [#allocation3], 0
      %s16 = sshll.u32 %s0, 4
      %s17 = int_to_ptr.hbm [resolvable:$true] %s16
      %s18 = sshll.u32 [#allocation2], 4
      %s19 = int_to_ptr.vmem [resolvable:$true] %s18
      %21 = dma.hbm_to_vmem [thread:$0]  %s17, 32, %s19, [#allocation3]
    $region5: #{tpu_custom_call.1} parent=1 // pred_fallthru
      _
    // Predicated region
    $region6: #{tpu_custom_call.1} parent=1 // pred_check
      _
    $region7: #{tpu_custom_call.1} parent=1 // pred_check_branch
      %23 = sbr.rel (0) target = $region9
    $region8: #{tpu_custom_call.1} parent=1 // pred_region
      %25 = vsyncadd [#allocation6], 0
      %s27 = sshll.u32 %s1, 4
      %s28 = int_to_ptr.hbm [resolvable:$true] %s27
      %s29 = sshll.u32 [#allocation5], 4
      %s30 = int_to_ptr.vmem [resolvable:$true] %s29
      %32 = dma.hbm_to_vmem [thread:$0]  %s28, 64, %s30, [#allocation6]
    $region9: #{tpu_custom_call.1} parent=1 // pred_fallthru
      _
    // Predicated region
    $region10: #{tpu_custom_call.1} parent=1 // pred_check
      _
    $region11: #{tpu_custom_call.1} parent=1 // pred_check_branch
      %34 = sbr.rel (0) target = $region13
    $region12: #{tpu_custom_call.1} parent=1 // pred_region
      _
    $region13: #{tpu_custom_call.1} parent=1 // pred_fallthru
      _
    // Predicated region
    $region14: #{tpu_custom_call.1} parent=1 // pred_check
      _
    $region15: #{tpu_custom_call.1} parent=1 // pred_check_branch
      %36 = sbr.rel (0) target = $region17
    $region16: #{tpu_custom_call.1} parent=1 // pred_region
      %38 = dma.done [#allocation3], 32
    $region17: #{tpu_custom_call.1} parent=1 // pred_fallthru
      _
    // Predicated region
    $region18: #{tpu_custom_call.1} parent=1 // pred_check
      _
    $region19: #{tpu_custom_call.1} parent=1 // pred_check_branch
      %40 = sbr.rel (0) target = $region21
    $region20: #{tpu_custom_call.1} parent=1 // pred_region
      %42 = dma.done [#allocation6], 64
    $region21: #{tpu_custom_call.1} parent=1 // pred_fallthru
      _
    %v43 = vld [vmem:[#allocation2] sm:$0x3]
    %v44 = vld [vmem:[#allocation5] sm:$0x1]
    %46 = vset.pattern.permute.xlu0 0
    %47 = vperm.xlu0 %46, %v43
    %v48 = vpop.permute.xlu0 %47
    %v50 = vperm.slane %v44, 0
    %v51 = vmul.f32 %v48, %v50
    %v52 = vld [vmem:[#allocation5 + $0x1] sm:$0x1]
    %53 = vset.pattern.permute.xlu0 1
    %54 = vperm.xlu0 %53, %v43
    %v55 = vpop.permute.xlu0 %54
    %v57 = vperm.slane %v52, 0
    %v58 = vmul.f32 %v55, %v57
    %v59 = vadd.f32 %v51, %v58
    %v60 = vld [vmem:[#allocation5 + $0x2] sm:$0x1]
    %61 = vset.pattern.permute.xlu0 2
    %62 = vperm.xlu0 %61, %v43
    %v63 = vpop.permute.xlu0 %62
    %v65 = vperm.slane %v60, 0
    %v66 = vmul.f32 %v63, %v65
    %v67 = vadd.f32 %v59, %v66
    %v68 = vld [vmem:[#allocation5 + $0x3] sm:$0x1]
    %69 = vset.pattern.permute.xlu0 3
    %70 = vperm.xlu0 %69, %v43
    %v71 = vpop.permute.xlu0 %70
    %v73 = vperm.slane %v68, 0
    %v74 = vmul.f32 %v71, %v73
    %v75 = vadd.f32 %v67, %v74
    %v76 = vld [vmem:[%s2] sm:$0x1]
    %v78 = vperm.slane %v76, 0
    %v80 = vadd.f32 %v75, %v78
    %v81 = vand.u32 2147483647, %v80
    %vm82 = vcmp.le.f32.partialorder %v81, 0.7853982
    %vm83 = vcmp.lt.s32.totalorder %v80, 0
    %v84 = vand.u32 %v80, 2139095040
    %v85 = vshrl.u32 %v84, 23
    %v86 = vsub.s32 %v85, 127
    %v87 = vand.u32 2147483647, %v80
    %v88 = vand.u32 %v87, 8388607
    %v89 = vor.u32 %v88, 8388608
    %v90 = vsub.s32 0, %v89
    %v91 = vadd.s32 %v86, 1
    %vm92 = vcmp.gt.s32.totalorder %v91, 0
    %v93 = vsel %vm92, %v91, 0
    %v94 = vshrl.u32 %v93, 5
    %v95 = vand.u32 %v93, 31
    %v96 = vsub.s32 32, %v95
    %v97 = vshrl.u32 683565275, %v96
    %v98 = vshll.u32 683565275, %v95
    %v99 = vshrl.u32 2475754826, %v96
    %v100 = vor.u32 %v98, %v99
    %v101 = vshll.u32 2475754826, %v95
    %v102 = vshrl.u32 2131351028, %v96
    %v103 = vor.u32 %v101, %v102
    %v104 = vshll.u32 2131351028, %v95
    %v105 = vshrl.u32 2102212464, %v96
    %v106 = vor.u32 %v104, %v105
    %v107 = vshll.u32 2102212464, %v95
    %v108 = vshrl.u32 920167782, %v96
    %v109 = vor.u32 %v107, %v108
    %v110 = vshll.u32 920167782, %v95
    %v111 = vshrl.u32 1326507024, %v96
    %v112 = vor.u32 %v110, %v111
    %vm113 = vcmp.lt.s32.totalorder %v94, 1
    %vm114 = vcmp.lt.s32.totalorder %v94, 2
    %vm115 = vcmp.lt.s32.totalorder %v94, 3
    %vm116 = vcmp.lt.s32.totalorder %v94, 4
    %v117 = vsel %vm113, %v97, %v100
    %v118 = vsel %vm116, %v106, 2102212464
    %v119 = vsel %vm115, %v103, %v118
    %v120 = vsel %vm114, %v117, %v119
    %v121 = vsel %vm113, %v100, %v103
    %v122 = vsel %vm116, %v109, 920167782
    %v123 = vsel %vm115, %v106, %v122
    %v124 = vsel %vm114, %v121, %v123
    %v125 = vsel %vm113, %v103, %v106
    %v126 = vsel %vm116, %v112, 1326507024
    %v127 = vsel %vm115, %v109, %v126
    %v128 = vsel %vm114, %v125, %v127
    %v129 = vshll.u32 %v89, 8
    %v130 = vand.u32 %v129, 65535
    %v131 = vshrl.u32 %v129, 16
    %v132 = vand.u32 %v128, 65535
    %v133 = vshrl.u32 %v128, 16
    %v134 = vmul.u32 %v130, %v132
    %v135 = vmul.u32 %v130, %v133
    %v136 = vmul.u32 %v131, %v132
    %v137 = vmul.u32 %v131, %v133
    %v138 = vshll.u32 %v135, 16
    %v139 = vshrl.u32 %v135, 16
    %v140 = vshll.u32 %v136, 16
    %v141 = vshrl.u32 %v136, 16
    %vm142 = vc.u32 %v134, %v138
    %v143 = vsel %vm142, 1, 0
    %v144 = vadd.s32 %v134, %v138
    %v145 = vadd.s32 %v137, %v143
    %vm146 = vc.u32 %v144, %v140
    %v147 = vsel %vm146, 1, 0
    %v148 = vadd.s32 %v144, %v140
    %v149 = vadd.s32 %v145, %v147
    %v150 = vadd.s32 %v149, %v139
    %v151 = vadd.s32 %v150, %v141
    %v152 = vand.u32 %v129, 65535
    %v153 = vshrl.u32 %v129, 16
    %v154 = vand.u32 %v124, 65535
    %v155 = vshrl.u32 %v124, 16
    %v156 = vmul.u32 %v152, %v154
    %v157 = vmul.u32 %v152, %v155
    %v158 = vmul.u32 %v153, %v154
    %v159 = vmul.u32 %v153, %v155
    %v160 = vshll.u32 %v157, 16
    %v161 = vshrl.u32 %v157, 16
    %v162 = vshll.u32 %v158, 16
    %v163 = vshrl.u32 %v158, 16
    %vm164 = vc.u32 %v156, %v160
    %v165 = vsel %vm164, 1, 0
    %v166 = vadd.s32 %v156, %v160
    %v167 = vadd.s32 %v159, %v165
    %vm168 = vc.u32 %v166, %v162
    %v169 = vsel %vm168, 1, 0
    %v170 = vadd.s32 %v166, %v162
    %v171 = vadd.s32 %v167, %v169
    %v172 = vadd.s32 %v171, %v161
    %v173 = vadd.s32 %v172, %v163
    %v174 = vmul.u32 %v129, %v120
    %v175 = vadd.s32 %v151, %v170
    %vm176 = vc.u32 %v151, %v170
    %v177 = vadd.s32 %v173, 1
    %v178 = vsel %vm176, %v177, %v173
    %v179 = vadd.s32 %v174, %v178
    %v180 = vadd.s32 %v179, 536870912
    %v181 = vshrl.u32 %v180, 30
    %v182 = vshll.u32 %v181, 30
    %v183 = vsub.s32 %v179, %v182
    %vm184 = vcmp.lt.s32.totalorder %v183, 0
    %v185 = vsub.s32 0, %v183
    %v186 = vsel %vm184, %v185, %v183
    %v187 = vclz %v186
    %v188 = vsub.s32 %v187, 2
    %vm189 = vcmp.gt.s32.totalorder 0, %v188
    %v190 = vsel %vm189, 0, %v188
    %v191 = vsub.s32 32, %v190
    %v192 = vshll.u32 %v183, %v190
    %v193 = vshrl.u32 %v175, %v191
    %v194 = vor.u32 %v192, %v193
    %v195 = vsub.s32 4294967266, %v190
    %v196 = vadd.s32 %v195, 127
    %v197 = vshll.u32 %v196, 23
    %v198 = vor.u32 4788187, %v197
    %v199 = vand.u32 2147483647, %v198
    %v201 = vcvt.s32.f32 %v194
    %v202 = vmul.f32 %v201, %v199
    %v203 = vxor.u32 %v202, 2147483648
    %v204 = vsel %vm83, %v203, %v202
    %v205 = vsub.s32 4, %v181
    %v206 = vsel %vm83, %v205, %v181
    %v207 = vsel %vm82, %v80, %v204
    %v208 = vsel %vm82, 0, %v206
    %v209 = vmul.f32 %v207, %v207
    %v210 = vmul.f32 %v209, -0.001358992
    %v211 = vadd.f32 %v210, 0.041655596
    %v212 = vmul.f32 %v209, %v211
    %v213 = vadd.f32 %v212, -0.4999988
    %v214 = vmul.f32 %v209, %v213
    %v215 = vadd.f32 1.0, %v214
    %v216 = vmul.f32 %v207, %v207
    %v217 = vmul.f32 %v216, -0.00019511016
    %v218 = vadd.f32 %v217, 0.008332121
    %v219 = vmul.f32 %v216, %v218
    %v220 = vadd.f32 %v219, -0.16666654
    %v221 = vmul.f32 %v216, %v220
    %v222 = vadd.f32 %v221, 1.0
    %v223 = vmul.f32 %v222, %v207
    %vm224 = vweird.f32 %v80
    %v225 = vadd.s32 %v208, 3
    %v226 = vand.u32 %v225, 3
    %vm227 = vcmp.lt.s32.totalorder %v226, 2
    %vm228 = vcmp.eq.s32.totalorder %v226, 0
    %v229 = vxor.u32 %v223, 2147483648
    %v230 = vsel %vm228, %v215, %v229
    %vm231 = vcmp.eq.s32.totalorder %v226, 2
    %v232 = vxor.u32 %v215, 2147483648
    %v233 = vsel %vm231, %v232, %v223
    %v234 = vsel %vm227, %v230, %v233
    %v235 = vsel %vm224, nan, %v234
    %236 = vst [vmem:[#allocation7] sm:$0x3] %v235
    // Predicated region
    $region22: #{tpu_custom_call.1} parent=1 // pred_check
      _
    $region23: #{tpu_custom_call.1} parent=1 // pred_check_branch
      %238 = sbr.rel (0) target = $region25
    $region24: #{tpu_custom_call.1} parent=1 // pred_region
      %240 = vsyncadd [#allocation4], 0
      %s242 = sshll.u32 [#allocation7], 4
      %s243 = int_to_ptr.vmem [resolvable:$true] %s242
      %s244 = sshll.u32 %s3, 4
      %s245 = int_to_ptr.hbm [resolvable:$true] %s244
      %247 = dma.vmem_to_hbm [thread:$0]  %s243, 32, %s245, [#allocation4]
    $region25: #{tpu_custom_call.1} parent=1 // pred_fallthru
      _
    // Predicated region
    $region26: #{tpu_custom_call.1} parent=1 // pred_check
      _
    $region27: #{tpu_custom_call.1} parent=1 // pred_check_branch
      %249 = sbr.rel (0) target = $region29
    $region28: #{tpu_custom_call.1} parent=1 // pred_region
      %251 = dma.done [#allocation4], 32
    $region29: #{tpu_custom_call.1} parent=1 // pred_fallthru
      _
    %252 = vsyncpa [#allocation3], 1
    %253 = vsyncpa [#allocation6], 1
    %254 = vsyncpa [#allocation4], 1

</llo_original>
